<compile_context>
chip_gen: v5e
topology: v5e:2x2
jax: 0.10.0
libtpu: 0.0.40
codegen_flags: <defaults>
</compile_context>

<pallas_src>
import functools
import math

import jax
import jax.numpy as jnp
from jax.experimental import pallas as pl
from jax.experimental.pallas import tpu as pltpu


def _round_up(x, m):
    return ((x + m - 1) // m) * m


def _physical_vmem_bytes():
    try:
        info = pltpu.get_tpu_info()
        v = getattr(info, "vmem_capacity_bytes", None)
        if v:
            return int(v)
    except Exception:
        pass
    return 128 * 1024 * 1024


def _vmem_limit(needed_bytes):
    """2x headroom over the estimated tile footprint, clamped per-chip."""
    phys = _physical_vmem_bytes()
    cap = min(int(phys * 0.75), phys - 16 * 1024 * 1024)   # 48 MiB v7x, 96 MiB v6e/v5e
    return int(min(max(2 * needed_bytes, 16 * 1024 * 1024), cap))


# -----------------------------------------------------------------------------
# Pallas kernels
# -----------------------------------------------------------------------------
def _gemm_kernel(x_ref, w_ref, b_ref, out_ref, acc_ref):
    """out[i,j] = sum_k x[i,k] @ w[k,j] + b[j]; K is the innermost grid axis."""
    k = pl.program_id(2)

    @pl.when(k == 0)
    def _():
        acc_ref[...] = jnp.zeros_like(acc_ref)

    acc_ref[...] += jnp.dot(x_ref[...], w_ref[...],
                            preferred_element_type=jnp.float32)

    @pl.when(k == pl.num_programs(2) - 1)
    def _():
        out_ref[...] = acc_ref[...] + b_ref[...]


def _gemm_kernel_single_k(x_ref, w_ref, b_ref, out_ref):
    """Single-K specialization: no accumulator scratch, direct store."""
    out_ref[...] = (jnp.dot(x_ref[...], w_ref[...],
                            preferred_element_type=jnp.float32) + b_ref[...])


def _attr_epilogue_kernel(score_ref, fcpre_ref, etab_ref, w2_ref, b2_ref,
                          attr_ref, *, num_scores):
    """Attribute head epilogue (inference path).

    label = argmax(score[:, :num_scores])            (first occurrence on ties)
    fc    = relu(fcpre + etab[label])                 fcpre already holds x@W1x + b1
    attr  = fc @ W2 + b2
    """
    y = score_ref[...]                                        # (tn, c1_pad) f32
    cols_i = jax.lax.broadcasted_iota(jnp.int32, y.shape, 1)
    masked = jnp.where(cols_i < num_scores, y, -jnp.inf)
    row_max = jnp.max(masked, axis=1, keepdims=True)
    cols = cols_i.astype(jnp.float32)
    label = jnp.min(jnp.where(masked == row_max, cols, float(y.shape[1])),
                    axis=1, keepdims=True)                    # (tn, 1) f32

    # One-hot gather of the folded embedding table via a bf16 MXU matmul.
    c1p = etab_ref.shape[0]
    oh_cols = jax.lax.broadcasted_iota(
        jnp.int32, (y.shape[0], c1p), 1).astype(jnp.float32)
    onehot = (oh_cols == label).astype(jnp.bfloat16)
    emb = jnp.dot(onehot, etab_ref[...], preferred_element_type=jnp.float32)

    fc = jnp.maximum(fcpre_ref[...] + emb, 0.0)               # f32 VPU work
    attr_ref[...] = (jnp.dot(fc.astype(jnp.bfloat16), w2_ref[...],
                             preferred_element_type=jnp.float32) + b2_ref[...])


# -----------------------------------------------------------------------------
# Module equivalent (inference path)
# -----------------------------------------------------------------------------
class BUADetectron2FastRCNNOutputLayersPallas:
    EMBED_DIM = 256          # fixed in the reference module
    ATTR_HIDDEN = 512        # fixed in the reference module

    def __init__(self, input_size, num_classes, cls_agnostic_bbox_reg,
                 box_dim=4, attr_on=False, num_attr_classes=400, key=None):
        if not isinstance(input_size, int):
            input_size = int(math.prod(input_size))
        self.input_size = input_size
        self.num_classes = num_classes
        self.attr_on = attr_on
        self.num_attr_classes = num_attr_classes
        num_bbox_reg_classes = 1 if cls_agnostic_bbox_reg else num_classes

        c1 = num_classes + 1
        nb = num_bbox_reg_classes * box_dim
        self.c1 = c1
        self.nbox_out = nb

        if key is None:
            key = jax.random.PRNGKey(0)
        k_cls, k_bbox, k_emb, k_a1, k_a2 = jax.random.split(key, 5)

        # --- f32 master copies (match PyTorch inits; used by the reference) ---
        self.wc = (0.01 * jax.random.normal(k_cls, (input_size, c1))
                   ).astype(jnp.float32)
        self.bc = jnp.zeros((c1,), jnp.float32)
        self.wb = (0.001 * jax.random.normal(k_bbox, (input_size, nb))
                   ).astype(jnp.float32)
        self.bb = jnp.zeros((nb,), jnp.float32)

        # --- K tiling (tk up to 1024 per review) ---
        kp = _round_up(input_size, 128)
        self.tk = kp if kp <= 1024 else 1024
        self.k_pad = _round_up(kp, self.tk)

        # --- lane-aligned fused column layout: [cls | bbox | attr-fc1(x)] ---
        h = self.ATTR_HIDDEN
        self.c1_pad = _round_up(c1, 128)
        self.box_off = self.c1_pad                  # 128-aligned bbox slice
        box_end = self.box_off + nb
        if attr_on:
            self.fc_off = _round_up(box_end, h)     # 512-aligned fc1(x) slice
            raw_cols = self.fc_off + h
        else:
            self.fc_off = None
            raw_cols = box_end
        raw_pad = _round_up(raw_cols, 128)
        if raw_pad <= 2048:
            self.tj = raw_pad
            self.c_pad = raw_pad
        else:
            # 512-multiples keep the attr fc1 slice block-aligned.
            best = None
            for cand in (2048, 1536, 1024):
                padded = _round_up(raw_cols, cand)
                if best is None or padded < best[0]:
                    best = (padded, cand)
            self.c_pad, self.tj = best

        if attr_on:
            e = self.EMBED_DIM
            # nn.Embedding default init: N(0, 1)
            self.cls_embed = jax.random.normal(k_emb, (c1, e)).astype(jnp.float32)
            w1 = (0.01 * jax.random.normal(k_a1, (input_size + e, h))
                  ).astype(jnp.float32)
            self.w1x = w1[:input_size]
            self.w1e = w1[input_size:]
            self.b1 = jnp.zeros((h,), jnp.float32)
            self.w2 = (0.01 * jax.random.normal(k_a2, (h, num_attr_classes))
                       ).astype(jnp.float32)
            self.b2 = jnp.zeros((num_attr_classes,), jnp.float32)

        # --- fused GEMM weight / bias (bf16 weight, f32 bias) ---
        wcat = jnp.zeros((self.k_pad, self.c_pad), jnp.float32)
        wcat = wcat.at[:input_size, :c1].set(self.wc)
        wcat = wcat.at[:input_size, self.box_off:box_end].set(self.wb)
        bcat = jnp.zeros((1, self.c_pad), jnp.float32)
        bcat = bcat.at[0, :c1].set(self.bc)
        bcat = bcat.at[0, self.box_off:box_end].set(self.bb)
        if attr_on:
            wcat = wcat.at[:input_size, self.fc_off:self.fc_off + h].set(self.w1x)
            # b1 stays f32, applied inside the fused GEMM bias add.
            bcat = bcat.at[0, self.fc_off:self.fc_off + h].set(self.b1)
        self.wcat_bf16 = wcat.astype(jnp.bfloat16)
        self.bcat = bcat

        if attr_on:
            # Folded embedding table E = cls_embed @ W1e, stored bf16.
            etab = jnp.zeros((self.c1_pad, h), jnp.float32)
            etab = etab.at[:c1].set(self.cls_embed @ self.w1e)
            self.etab_bf16 = etab.astype(jnp.bfloat16)
            self.a_pad = _round_up(num_attr_classes, 128)
            w2p = jnp.zeros((h, self.a_pad), jnp.float32
                            ).at[:, :num_attr_classes].set(self.w2)
            self.w2_bf16 = w2p.astype(jnp.bfloat16)
            self.b2_pad = jnp.zeros((1, self.a_pad), jnp.float32
                                    ).at[0, :num_attr_classes].set(self.b2)

    # ------------------------------------------------------------------ GEMM
    def _run_gemm(self, xp, n_pad, tn):
        ni = n_pad // tn
        nj = self.c_pad // self.tj
        nk = self.k_pad // self.tk
        out_shape = jax.ShapeDtypeStruct((n_pad, self.c_pad), jnp.float32)

        if nk == 1:
            needed = (2 * tn * self.tk * 2 + 2 * self.tk * self.tj * 2 +
                      2 * 8 * self.tj * 4 + 2 * tn * self.tj * 4)
            return pl.pallas_call(
                _gemm_kernel_single_k,
                grid=(ni, nj),
                in_specs=[
                    pl.BlockSpec((tn, self.tk), lambda i, j: (i, 0)),
                    pl.BlockSpec((self.tk, self.tj), lambda i, j: (0, j)),
                    pl.BlockSpec((1, self.tj), lambda i, j: (0, j)),
                ],
                out_specs=pl.BlockSpec((tn, self.tj), lambda i, j: (i, j)),
                out_shape=out_shape,
                compiler_params=pltpu.CompilerParams(
                    dimension_semantics=("parallel", "parallel"),
                    vmem_limit_bytes=_vmem_limit(needed)),
            )(xp, self.wcat_bf16, self.bcat)

        needed = (2 * tn * self.tk * 2 + 2 * self.tk * self.tj * 2 +
                  2 * 8 * self.tj * 4 + 2 * tn * self.tj * 4 +
                  tn * self.tj * 4)
        return pl.pallas_call(
            _gemm_kernel,
            grid=(ni, nj, nk),
            in_specs=[
                pl.BlockSpec((tn, self.tk), lambda i, j, k: (i, k)),
                pl.BlockSpec((self.tk, self.tj), lambda i, j, k: (k, j)),
                pl.BlockSpec((1, self.tj), lambda i, j, k: (0, j)),
            ],
            out_specs=pl.BlockSpec((tn, self.tj), lambda i, j, k: (i, j)),
            out_shape=out_shape,
            scratch_shapes=[pltpu.VMEM((tn, self.tj), jnp.float32)],
            compiler_params=pltpu.CompilerParams(
                dimension_semantics=("parallel", "parallel", "arbitrary"),
                vmem_limit_bytes=_vmem_limit(needed)),
        )(xp, self.wcat_bf16, self.bcat)

    # -------------------------------------------------------- attr epilogue
    def _run_attr_epilogue(self, out, n_pad):
        if n_pad % 256 == 0:
            tn2 = 256
        elif n_pad % 128 == 0:
            tn2 = 128
        else:
            tn2 = n_pad
        h = self.ATTR_HIDDEN
        fc_blk = self.fc_off // h
        needed = (2 * tn2 * self.c1_pad * 4 + 2 * tn2 * h * 4 +
                  2 * self.c1_pad * h * 2 + 2 * h * self.a_pad * 2 +
                  2 * 8 * self.a_pad * 4 + 2 * tn2 * self.a_pad * 4 +
                  4 * tn2 * self.c1_pad * 4)
        kern = functools.partial(_attr_epilogue_kernel, num_scores=self.c1)
        return pl.pallas_call(
            kern,
            grid=(n_pad // tn2,),
            in_specs=[
                # score columns only (argmax works on c1_pad, not c_pad)
                pl.BlockSpec((tn2, self.c1_pad), lambda i: (i, 0)),
                # fc1(x) + b1 block, 512-aligned inside the fused output slab
                pl.BlockSpec((tn2, h), lambda i, _b=fc_blk: (i, _b)),
                pl.BlockSpec((self.c1_pad, h), lambda i: (0, 0)),
                pl.BlockSpec((h, self.a_pad), lambda i: (0, 0)),
                pl.BlockSpec((1, self.a_pad), lambda i: (0, 0)),
            ],
            out_specs=pl.BlockSpec((tn2, self.a_pad), lambda i: (i, 0)),
            out_shape=jax.ShapeDtypeStruct((n_pad, self.a_pad), jnp.float32),
            compiler_params=pltpu.CompilerParams(
                dimension_semantics=("parallel",),
                vmem_limit_bytes=_vmem_limit(needed)),
        )(out, out, self.etab_bf16, self.w2_bf16, self.b2_pad)

    # --------------------------------------------------------------- forward
    def __call__(self, x, proposal_boxes=None):
        # torch.flatten(x, start_dim=1) equivalent.
        if x.ndim > 2:
            x = x.reshape(x.shape[0], -1)
        n = x.shape[0]

        # Large row tile -> the fused weight is streamed from HBM once for
        # realistic proposal counts (N <= 1024); the j axis supplies the
        # cross-TensorCore parallel work on v7x.
        tn = _round_up(n, 8) if n <= 1024 else 1024
        n_pad = _round_up(n, tn)
        xp = jnp.pad(x.astype(jnp.bfloat16),
                     ((0, n_pad - n), (0, self.k_pad - self.input_size)))

        out = self._run_gemm(xp, n_pad, tn)
        scores = out[:n, :self.c1]
        deltas = out[:n, self.box_off:self.box_off + self.nbox_out]
        if not self.attr_on:
            return scores, deltas

        # Inference branch of the attribute head (self.training == False).
        # TODO(synk): training branch (select_foreground_proposals over
        # proposal Instances with gt_classes / gt_attributes) is
        # data-structure dependent and not implemented here.
        attr = self._run_attr_epilogue(out, n_pad)
        attr_score = attr[:n, :self.num_attr_classes]
        return scores, deltas, attr_score, None


# -----------------------------------------------------------------------------
# Pure-JAX f32 reference (matches the PyTorch module math)
# -----------------------------------------------------------------------------
def _reference(model, x, labels=None):
    if x.ndim > 2:
        x = x.reshape(x.shape[0], -1)
    x = x.astype(jnp.float32)
    scores = x @ model.wc + model.bc
    deltas = x @ model.wb + model.bb
    if not model.attr_on:
        return scores, deltas
    if labels is None:
        labels = jnp.argmax(scores, axis=1)
    emb = jnp.take(model.cls_embed, labels, axis=0)
    fc = jnp.maximum(x @ model.w1x + emb @ model.w1e + model.b1, 0.0)
    attr = fc @ model.w2 + model.b2
    return scores, deltas, attr, None


if __name__ == "__main__":
    key = jax.random.PRNGKey(0)
    k_p1, k_p2, k_p3, k_p4, k_x = jax.random.split(key, 5)

    N = 16               # number of proposals
    INPUT_SIZE = 32      # flattened box feature size
    NUM_CLASSES = 8
    BOX_DIM = 4
    NUM_ATTR = 32

    x = jax.random.normal(k_x, (N, INPUT_SIZE), dtype=jnp.float32)

    # --- attr_on=True (inference path: fused GEMM + split attr epilogue) ---
    model = BUADetectron2FastRCNNOutputLayersPallas(
        input_size=INPUT_SIZE, num_classes=NUM_CLASSES,
        cls_agnostic_bbox_reg=False, box_dim=BOX_DIM,
        attr_on=True, num_attr_classes=NUM_ATTR, key=k_p1)
    scores, deltas, attr_score, _ = model(x)
    jax.block_until_ready((scores, deltas, attr_score))

    ref_scores, ref_deltas, _, _ = _reference(model, x)
    assert scores.shape == (N, NUM_CLASSES + 1)
    assert deltas.shape == (N, NUM_CLASSES * BOX_DIM)
    assert attr_score.shape == (N, NUM_ATTR)
    # bf16 matmul inputs (f32 accumulate) -> loosened tolerances vs f32 ref.
    assert jnp.allclose(scores, ref_scores, atol=5e-3)
    assert jnp.allclose(deltas, ref_deltas, atol=5e-3)
    # Build the attr reference from the kernel's argmax so the check is not
    # sensitive to bf16-vs-f32 tie-breaking on near-equal scores.
    # (Production parity note: the in-kernel label can differ from an f32
    #  argmax on near-tied scores.)
    kernel_labels = jnp.argmax(scores, axis=1)
    _, _, ref_attr, _ = _reference(model, x, labels=kernel_labels)
    assert jnp.allclose(attr_score, ref_attr, atol=1e-2)

    # --- attr_on=False, class-agnostic bbox path ---
    model2 = BUADetectron2FastRCNNOutputLayersPallas(
        input_size=INPUT_SIZE, num_classes=NUM_CLASSES,
        cls_agnostic_bbox_reg=True, box_dim=BOX_DIM,
        attr_on=False, key=k_p2)
    s2, d2 = model2(x)
    jax.block_until_ready((s2, d2))
    rs2, rd2 = _reference(model2, x)
    assert d2.shape == (N, BOX_DIM)
    assert jnp.allclose(s2, rs2, atol=5e-3)
    assert jnp.allclose(d2, rd2, atol=5e-3)

    # --- 4-D (NCHW) feature-map input exercises the flatten path (2*4*4=32) ---
    x4 = jax.random.normal(jax.random.PRNGKey(1), (N, 2, 4, 4),
                           dtype=jnp.float32)
    s3, d3 = model2(x4)
    jax.block_until_ready((s3, d3))
    rs3, rd3 = _reference(model2, x4)
    assert jnp.allclose(s3, rs3, atol=5e-3)
    assert jnp.allclose(d3, rd3, atol=5e-3)

    # --- multi-K-tile path (input_size > 1024 -> tk=1024, 2 K steps) ---
    model3 = BUADetectron2FastRCNNOutputLayersPallas(
        input_size=1152, num_classes=NUM_CLASSES,
        cls_agnostic_bbox_reg=False, box_dim=BOX_DIM,
        attr_on=False, key=k_p3)
    xk = jax.random.normal(jax.random.PRNGKey(2), (N, 1152), dtype=jnp.float32)
    s4, d4 = model3(xk)
    jax.block_until_ready((s4, d4))
    rs4, rd4 = _reference(model3, xk)
    assert jnp.allclose(s4, rs4, atol=2e-2)
    assert jnp.allclose(d4, rd4, atol=5e-3)

    # --- multi-j (column-tiled) path (c_pad > 2048 -> >=2 column tiles) ---
    model4 = BUADetectron2FastRCNNOutputLayersPallas(
        input_size=INPUT_SIZE, num_classes=600,
        cls_agnostic_bbox_reg=False, box_dim=BOX_DIM,
        attr_on=False, key=k_p4)
    s5, d5 = model4(x)
    jax.block_until_ready((s5, d5))
    rs5, rd5 = _reference(model4, x)
    assert s5.shape == (N, 601) and d5.shape == (N, 2400)
    assert jnp.allclose(s5, rs5, atol=5e-3)
    assert jnp.allclose(d5, rd5, atol=5e-3)

    print("KERNEL_OK")
</pallas_src>

<mosaic_0001>
module attributes {stable_mosaic.version = 11 : i64} {
  func.func @_gemm_kernel_single_k(%arg0: i32, %arg1: i32, %arg2: memref<16x128xbf16, #tpu.memory_space<vmem>>, %arg3: memref<128x1024xbf16, #tpu.memory_space<vmem>>, %arg4: memref<1x1024xf32, #tpu.memory_space<vmem>>, %arg5: memref<16x1024xf32, #tpu.memory_space<vmem>>) attributes {dimension_semantics = [#tpu.dimension_semantics<parallel>, #tpu.dimension_semantics<parallel>], iteration_bounds = array<i64: 1, 1>, scalar_prefetch = 0 : i64, scratch_operands = 0 : i64, tpu.core_type = #tpu.core_type<tc>, window_params = [{transform_indices = @transform_0, window_bounds = array<i64: 16, 128>}, {transform_indices = @transform_1, window_bounds = array<i64: 128, 1024>}, {transform_indices = @transform_2, window_bounds = array<i64: 1, 1024>}, {transform_indices = @transform_3, window_bounds = array<i64: 16, 1024>}]} {
    %c0 = arith.constant 0 : index
    %c0_0 = arith.constant 0 : index
    %0 = vector.load %arg2[%c0, %c0_0] : memref<16x128xbf16, #tpu.memory_space<vmem>>, vector<16x128xbf16>
    %c0_1 = arith.constant 0 : index
    %c0_2 = arith.constant 0 : index
    %1 = vector.load %arg3[%c0_1, %c0_2] : memref<128x1024xbf16, #tpu.memory_space<vmem>>, vector<128x1024xbf16>
    %cst = arith.constant dense<0.000000e+00> : vector<16x1024xf32>
    %2 = tpu.matmul %0, %1, %cst {dimension_numbers = #tpu.dot_dimension_numbers<[1], [0], [0], [1], [0, 0, 1, 1], [], []>} : vector<16x128xbf16>, vector<128x1024xbf16>, vector<16x1024xf32> -> vector<16x1024xf32>
    %c0_3 = arith.constant 0 : index
    %c0_4 = arith.constant 0 : index
    %3 = vector.load %arg4[%c0_3, %c0_4] : memref<1x1024xf32, #tpu.memory_space<vmem>>, vector<1x1024xf32>
    %4 = vector.broadcast %3 : vector<1x1024xf32> to vector<16x1024xf32>
    %5 = arith.addf %2, %4 : vector<16x1024xf32>
    %c0_5 = arith.constant 0 : index
    %c0_6 = arith.constant 0 : index
    %6 = vector.load %arg5[%c0_5, %c0_6] : memref<16x1024xf32, #tpu.memory_space<vmem>>, vector<16x1024xf32>
    tpu.vector_store %arg5[%c0_5, %c0_6], %5 {strides = array<i32>} : memref<16x1024xf32, #tpu.memory_space<vmem>>, vector<16x1024xf32>,
    return
  }
  func.func @transform_0(%arg0: i32, %arg1: i32) -> (i32, i32) {
    %c0_i32 = arith.constant 0 : i32
    %c0_i32_0 = arith.constant 0 : i32
    return %arg0, %c0_i32 : i32, i32
  }
  func.func @transform_1(%arg0: i32, %arg1: i32) -> (i32, i32) {
    %c0_i32 = arith.constant 0 : i32
    %c0_i32_0 = arith.constant 0 : i32
    return %c0_i32, %arg1 : i32, i32
  }
  func.func @transform_2(%arg0: i32, %arg1: i32) -> (i32, i32) {
    %c0_i32 = arith.constant 0 : i32
    %c0_i32_0 = arith.constant 0 : i32
    return %c0_i32, %arg1 : i32, i32
  }
  func.func @transform_3(%arg0: i32, %arg1: i32) -> (i32, i32) {
    %c0_i32 = arith.constant 0 : i32
    return %arg0, %arg1 : i32, i32
  }
}

</mosaic_0001>

<llo_original>
// kernel: tpu_custom_call.1
$region0: #{tpu_custom_call.1}
  #allocation0 [shape = 'u32[]', space=smem, size = 0x4, offset = 0x4, fixed_abs, tag = 'smem constant byte address 0x4 - core index']
  #allocation1 [shape = 'u32[72,128]{1,0:T(1,128)}', space=vmem, size = 0x9000, scoped, tag = 'internal scratch']
  %s0 = inlined_call_operand.hbm [shape: bf16[16,128], index: 0, kind: input, shape index: {}]
  %s1 = inlined_call_operand.hbm [shape: bf16[128,1024], index: 1, kind: input, shape index: {}]
  %s2 = inlined_call_operand.hbm [shape: f32[1,1024], index: 2, kind: input, shape index: {}]
  %s3 = inlined_call_operand.hbm [shape: f32[16,1024], index: 3, kind: output, shape index: {}]
  %s4 = sld [smem:[#allocation0]]
  $region34: #{tpu_custom_call.1} parent=0
    _
  %s6 = ssub.s32 1, %s4
  %s7 = scalar_select 0, %s6, %s4
  $region1: #{tpu_custom_call.1} parent=0
    #allocation2 [shape = 'u8[4096]{0}', space=vmem, size = 0x1000, scoped, tag = 'input window, operand 0, single buffered']
    #allocation3 [shape = 's32[1]{0}', space=sflag, size = 0x4, scoped, tag = 'scoped memory for tpu_custom_call.1']
    #allocation4 [shape = 's32[1]{0}', space=sflag, size = 0x4, scoped, tag = 'scoped memory for tpu_custom_call.1']
    #allocation5 [shape = 'u8[262144]{0}', space=vmem, size = 0x40000, scoped, tag = 'input window, operand 1, single buffered']
    #allocation6 [shape = 's32[1]{0}', space=sflag, size = 0x4, scoped, tag = 'scoped memory for tpu_custom_call.1']
    #allocation7 [shape = 'u8[4096]{0}', space=vmem, size = 0x1000, scoped, tag = 'input window, operand 2, single buffered']
    #allocation8 [shape = 'u8[65536]{0}', space=vmem, size = 0x10000, scoped, tag = 'output window, operand 0, single buffered']
    %8 = vsyncpa [#allocation3], 0
    %9 = vsyncpa [#allocation6], 0
    %10 = vsyncpa [#allocation4], 0
    // Predicated region
    $region2: #{tpu_custom_call.1} parent=1 // pred_check
      _
    $region3: #{tpu_custom_call.1} parent=1 // pred_check_branch
      %12 = sbr.rel (0) target = $region5
    $region4: #{tpu_custom_call.1} parent=1 // pred_region
      %14 = vsyncadd [#allocation3], 0
      %s15 = sshll.u32 %s0, 4
      %s16 = int_to_ptr.hbm [resolvable:$true] %s15
      %s17 = sshll.u32 [#allocation2], 4
      %s18 = int_to_ptr.vmem [resolvable:$true] %s17
      %23 = dma.hbm_to_vmem [thread:$0]  %s16, 128, %s18, [#allocation3], 64, 64, 4
    $region5: #{tpu_custom_call.1} parent=1 // pred_fallthru
      _
    // Predicated region
    $region6: #{tpu_custom_call.1} parent=1 // pred_check
      _
    $region7: #{tpu_custom_call.1} parent=1 // pred_check_branch
      %25 = sbr.rel (0) target = $region9
    $region8: #{tpu_custom_call.1} parent=1 // pred_region
      %27 = vsyncadd [#allocation6], 0
      %s28 = sshll.u32 %s1, 4
      %s29 = int_to_ptr.hbm [resolvable:$true] %s28
      %s30 = sshll.u32 [#allocation5], 4
      %s31 = int_to_ptr.vmem [resolvable:$true] %s30
      %36 = dma.hbm_to_vmem [thread:$0]  %s29, 8192, %s31, [#allocation6], 512, 512, 32
    $region9: #{tpu_custom_call.1} parent=1 // pred_fallthru
      _
    // Predicated region
    $region10: #{tpu_custom_call.1} parent=1 // pred_check
      _
    $region11: #{tpu_custom_call.1} parent=1 // pred_check_branch
      %38 = sbr.rel (0) target = $region13
    $region12: #{tpu_custom_call.1} parent=1 // pred_region
      %40 = vsyncadd [#allocation6], 0
      %s42 = sshll.u32 %s2, 4
      %s43 = int_to_ptr.hbm [resolvable:$true] %s42
      %s44 = sshll.u32 [#allocation7], 4
      %s45 = int_to_ptr.vmem [resolvable:$true] %s44
      %47 = dma.hbm_to_vmem [thread:$0]  %s43, 128, %s45, [#allocation6]
    $region13: #{tpu_custom_call.1} parent=1 // pred_fallthru
      _
    // Predicated region
    $region14: #{tpu_custom_call.1} parent=1 // pred_check
      _
    $region15: #{tpu_custom_call.1} parent=1 // pred_check_branch
      %49 = sbr.rel (0) target = $region17
    $region16: #{tpu_custom_call.1} parent=1 // pred_region
      %51 = dma.done [#allocation3], 128
    $region17: #{tpu_custom_call.1} parent=1 // pred_fallthru
      _
    // Predicated region
    $region18: #{tpu_custom_call.1} parent=1 // pred_check
      _
    $region19: #{tpu_custom_call.1} parent=1 // pred_check_branch
      %53 = sbr.rel (0) target = $region21
    $region20: #{tpu_custom_call.1} parent=1 // pred_region
      %55 = dma.done [#allocation6], 8192
    $region21: #{tpu_custom_call.1} parent=1 // pred_fallthru
      _
    // Predicated region
    $region22: #{tpu_custom_call.1} parent=1 // pred_check
      _
    $region23: #{tpu_custom_call.1} parent=1 // pred_check_branch
      %57 = sbr.rel (0) target = $region25
    $region24: #{tpu_custom_call.1} parent=1 // pred_region
      %59 = dma.done [#allocation6], 128
    $region25: #{tpu_custom_call.1} parent=1 // pred_fallthru
      _
    %v60 = vld [vmem:[#allocation2] sm:$0xf]
    %v61 = vld [vmem:[#allocation2 + $0x4] sm:$0xf]
    %v62 = vld [vmem:[#allocation5] sm:$0xff]
    %v63 = vld [vmem:[#allocation5 + $0x8] sm:$0xff]
    %v64 = vld [vmem:[#allocation5 + $0x10] sm:$0xff]
    %v65 = vld [vmem:[#allocation5 + $0x18] sm:$0xff]
    %v66 = vld [vmem:[#allocation5 + $0x20] sm:$0xff]
    %v67 = vld [vmem:[#allocation5 + $0x28] sm:$0xff]
    %v68 = vld [vmem:[#allocation5 + $0x30] sm:$0xff]
    %v69 = vld [vmem:[#allocation5 + $0x38] sm:$0xff]
    %v70 = vld [vmem:[#allocation5 + $0x40] sm:$0xff]
    %v71 = vld [vmem:[#allocation5 + $0x48] sm:$0xff]
    %v72 = vld [vmem:[#allocation5 + $0x50] sm:$0xff]
    %v73 = vld [vmem:[#allocation5 + $0x58] sm:$0xff]
    %v74 = vld [vmem:[#allocation5 + $0x60] sm:$0xff]
    %v75 = vld [vmem:[#allocation5 + $0x68] sm:$0xff]
    %v76 = vld [vmem:[#allocation5 + $0x70] sm:$0xff]
    %v77 = vld [vmem:[#allocation5 + $0x78] sm:$0xff]
    %v78 = vld [vmem:[#allocation5 + $0x80] sm:$0xff]
    %v79 = vld [vmem:[#allocation5 + $0x88] sm:$0xff]
    %v80 = vld [vmem:[#allocation5 + $0x90] sm:$0xff]
    %v81 = vld [vmem:[#allocation5 + $0x98] sm:$0xff]
    %v82 = vld [vmem:[#allocation5 + $0xa0] sm:$0xff]
    %v83 = vld [vmem:[#allocation5 + $0xa8] sm:$0xff]
    %v84 = vld [vmem:[#allocation5 + $0xb0] sm:$0xff]
    %v85 = vld [vmem:[#allocation5 + $0xb8] sm:$0xff]
    %v86 = vld [vmem:[#allocation5 + $0xc0] sm:$0xff]
    %v87 = vld [vmem:[#allocation5 + $0xc8] sm:$0xff]
    %v88 = vld [vmem:[#allocation5 + $0xd0] sm:$0xff]
    %v89 = vld [vmem:[#allocation5 + $0xd8] sm:$0xff]
    %v90 = vld [vmem:[#allocation5 + $0xe0] sm:$0xff]
    %v91 = vld [vmem:[#allocation5 + $0xe8] sm:$0xff]
    %v92 = vld [vmem:[#allocation5 + $0xf0] sm:$0xff]
    %v93 = vld [vmem:[#allocation5 + $0xf8] sm:$0xff]
    %v94 = vld [vmem:[#allocation5 + $0x100] sm:$0xff]
    %v95 = vld [vmem:[#allocation5 + $0x108] sm:$0xff]
    %v96 = vld [vmem:[#allocation5 + $0x110] sm:$0xff]
    %v97 = vld [vmem:[#allocation5 + $0x118] sm:$0xff]
    %v98 = vld [vmem:[#allocation5 + $0x120] sm:$0xff]
    %v99 = vld [vmem:[#allocation5 + $0x128] sm:$0xff]
    %v100 = vld [vmem:[#allocation5 + $0x130] sm:$0xff]
    %v101 = vld [vmem:[#allocation5 + $0x138] sm:$0xff]
    %v102 = vld [vmem:[#allocation5 + $0x140] sm:$0xff]
    %v103 = vld [vmem:[#allocation5 + $0x148] sm:$0xff]
    %v104 = vld [vmem:[#allocation5 + $0x150] sm:$0xff]
    %v105 = vld [vmem:[#allocation5 + $0x158] sm:$0xff]
    %v106 = vld [vmem:[#allocation5 + $0x160] sm:$0xff]
    %v107 = vld [vmem:[#allocation5 + $0x168] sm:$0xff]
    %v108 = vld [vmem:[#allocation5 + $0x170] sm:$0xff]
    %v109 = vld [vmem:[#allocation5 + $0x178] sm:$0xff]
    %v110 = vld [vmem:[#allocation5 + $0x180] sm:$0xff]
    %v111 = vld [vmem:[#allocation5 + $0x188] sm:$0xff]
    %v112 = vld [vmem:[#allocation5 + $0x190] sm:$0xff]
    %v113 = vld [vmem:[#allocation5 + $0x198] sm:$0xff]
    %v114 = vld [vmem:[#allocation5 + $0x1a0] sm:$0xff]
    %v115 = vld [vmem:[#allocation5 + $0x1a8] sm:$0xff]
    %v116 = vld [vmem:[#allocation5 + $0x1b0] sm:$0xff]
    %v117 = vld [vmem:[#allocation5 + $0x1b8] sm:$0xff]
    %v118 = vld [vmem:[#allocation5 + $0x1c0] sm:$0xff]
    %v119 = vld [vmem:[#allocation5 + $0x1c8] sm:$0xff]
    %v120 = vld [vmem:[#allocation5 + $0x1d0] sm:$0xff]
    %v121 = vld [vmem:[#allocation5 + $0x1d8] sm:$0xff]
    %v122 = vld [vmem:[#allocation5 + $0x1e0] sm:$0xff]
    %v123 = vld [vmem:[#allocation5 + $0x1e8] sm:$0xff]
    %v124 = vld [vmem:[#allocation5 + $0x1f0] sm:$0xff]
    %v125 = vld [vmem:[#allocation5 + $0x1f8] sm:$0xff]
    %v126 = vld [vmem:[#allocation7] sm:$0xff]
    %v128 = vperm.slane %v126, 0
    %v129 = vperm.slane %v126, 1
    %v130 = vperm.slane %v126, 2
    %v131 = vperm.slane %v126, 3
    %v132 = vperm.slane %v126, 4
    %v133 = vperm.slane %v126, 5
    %v134 = vperm.slane %v126, 6
    %v135 = vperm.slane %v126, 7
    %v146 = vunpack.c.l.b16 %v60
    %v147 = vunpack.c.l.b16 %v61
    %v148 = vpack.c.b16 %v147, %v146
    %v214 = vunpack.c.l.b16 %v62
    %v215 = vunpack.c.h.b16 %v62
    %v216 = vunpack.c.l.b16 %v63
    %v217 = vunpack.c.h.b16 %v63
    %v218 = vunpack.c.l.b16 %v64
    %v219 = vunpack.c.h.b16 %v64
    %v220 = vunpack.c.l.b16 %v65
    %v221 = vunpack.c.h.b16 %v65
    %v222 = vunpack.c.l.b16 %v66
    %v223 = vunpack.c.h.b16 %v66
    %v224 = vunpack.c.l.b16 %v67
    %v225 = vunpack.c.h.b16 %v67
    %v226 = vunpack.c.l.b16 %v68
    %v227 = vunpack.c.h.b16 %v68
    %v228 = vunpack.c.l.b16 %v69
    %v229 = vunpack.c.h.b16 %v69
    %v230 = vunpack.c.l.b16 %v70
    %v231 = vunpack.c.h.b16 %v70
    %v232 = vunpack.c.l.b16 %v71
    %v233 = vunpack.c.h.b16 %v71
    %v234 = vunpack.c.l.b16 %v72
    %v235 = vunpack.c.h.b16 %v72
    %v236 = vunpack.c.l.b16 %v73
    %v237 = vunpack.c.h.b16 %v73
    %v238 = vunpack.c.l.b16 %v74
    %v239 = vunpack.c.h.b16 %v74
    %v240 = vunpack.c.l.b16 %v75
    %v241 = vunpack.c.h.b16 %v75
    %v242 = vunpack.c.l.b16 %v76
    %v243 = vunpack.c.h.b16 %v76
    %v244 = vunpack.c.l.b16 %v77
    %v245 = vunpack.c.h.b16 %v77
    %v246 = vunpack.c.l.b16 %v78
    %v247 = vunpack.c.h.b16 %v78
    %v248 = vunpack.c.l.b16 %v79
    %v249 = vunpack.c.h.b16 %v79
    %v250 = vunpack.c.l.b16 %v80
    %v251 = vunpack.c.h.b16 %v80
    %v252 = vunpack.c.l.b16 %v81
    %v253 = vunpack.c.h.b16 %v81
    %v254 = vunpack.c.l.b16 %v82
    %v255 = vunpack.c.h.b16 %v82
    %v256 = vunpack.c.l.b16 %v83
    %v257 = vunpack.c.h.b16 %v83
    %v258 = vunpack.c.l.b16 %v84
    %v259 = vunpack.c.h.b16 %v84
    %v260 = vunpack.c.l.b16 %v85
    %v261 = vunpack.c.h.b16 %v85
    %v262 = vunpack.c.l.b16 %v86
    %v263 = vunpack.c.h.b16 %v86
    %v264 = vunpack.c.l.b16 %v87
    %v265 = vunpack.c.h.b16 %v87
    %v266 = vunpack.c.l.b16 %v88
    %v267 = vunpack.c.h.b16 %v88
    %v268 = vunpack.c.l.b16 %v89
    %v269 = vunpack.c.h.b16 %v89
    %v270 = vunpack.c.l.b16 %v90
    %v271 = vunpack.c.h.b16 %v90
    %v272 = vunpack.c.l.b16 %v91
    %v273 = vunpack.c.h.b16 %v91
    %v274 = vunpack.c.l.b16 %v92
    %v275 = vunpack.c.h.b16 %v92
    %v276 = vunpack.c.l.b16 %v93
    %v277 = vunpack.c.h.b16 %v93
    %v278 = vunpack.c.l.b16 %v94
    %v279 = vunpack.c.h.b16 %v94
    %v280 = vunpack.c.l.b16 %v95
    %v281 = vunpack.c.h.b16 %v95
    %v282 = vunpack.c.l.b16 %v96
    %v283 = vunpack.c.h.b16 %v96
    %v284 = vunpack.c.l.b16 %v97
    %v285 = vunpack.c.h.b16 %v97
    %v286 = vunpack.c.l.b16 %v98
    %v287 = vunpack.c.h.b16 %v98
    %v288 = vunpack.c.l.b16 %v99
    %v289 = vunpack.c.h.b16 %v99
    %v290 = vunpack.c.l.b16 %v100
    %v291 = vunpack.c.h.b16 %v100
    %v292 = vunpack.c.l.b16 %v101
    %v293 = vunpack.c.h.b16 %v101
    %v294 = vunpack.c.l.b16 %v102
    %v295 = vunpack.c.h.b16 %v102
    %v296 = vunpack.c.l.b16 %v103
    %v297 = vunpack.c.h.b16 %v103
    %v298 = vunpack.c.l.b16 %v104
    %v299 = vunpack.c.h.b16 %v104
    %v300 = vunpack.c.l.b16 %v105
    %v301 = vunpack.c.h.b16 %v105
    %v302 = vunpack.c.l.b16 %v106
    %v303 = vunpack.c.h.b16 %v106
    %v304 = vunpack.c.l.b16 %v107
    %v305 = vunpack.c.h.b16 %v107
    %v306 = vunpack.c.l.b16 %v108
    %v307 = vunpack.c.h.b16 %v108
    %v308 = vunpack.c.l.b16 %v109
    %v309 = vunpack.c.h.b16 %v109
    %v310 = vunpack.c.l.b16 %v110
    %v311 = vunpack.c.h.b16 %v110
    %v312 = vunpack.c.l.b16 %v111
    %v313 = vunpack.c.h.b16 %v111
    %v314 = vunpack.c.l.b16 %v112
    %v315 = vunpack.c.h.b16 %v112
    %v316 = vunpack.c.l.b16 %v113
    %v317 = vunpack.c.h.b16 %v113
    %v318 = vunpack.c.l.b16 %v114
    %v319 = vunpack.c.h.b16 %v114
    %v320 = vunpack.c.l.b16 %v115
    %v321 = vunpack.c.h.b16 %v115
    %v322 = vunpack.c.l.b16 %v116
    %v323 = vunpack.c.h.b16 %v116
    %v324 = vunpack.c.l.b16 %v117
    %v325 = vunpack.c.h.b16 %v117
    %v326 = vunpack.c.l.b16 %v118
    %v327 = vunpack.c.h.b16 %v118
    %v328 = vunpack.c.l.b16 %v119
    %v329 = vunpack.c.h.b16 %v119
    %v330 = vunpack.c.l.b16 %v120
    %v331 = vunpack.c.h.b16 %v120
    %v332 = vunpack.c.l.b16 %v121
    %v333 = vunpack.c.h.b16 %v121
    %v334 = vunpack.c.l.b16 %v122
    %v335 = vunpack.c.h.b16 %v122
    %v336 = vunpack.c.l.b16 %v123
    %v337 = vunpack.c.h.b16 %v123
    %v338 = vunpack.c.l.b16 %v124
    %v339 = vunpack.c.h.b16 %v124
    %v340 = vunpack.c.l.b16 %v125
    %v341 = vunpack.c.h.b16 %v125
    %v342 = vpack.c.b16 %v222, %v214
    %v343 = vpack.c.b16 %v223, %v215
    %v344 = vpack.c.b16 %v224, %v216
    %v345 = vpack.c.b16 %v225, %v217
    %v346 = vpack.c.b16 %v226, %v218
    %v347 = vpack.c.b16 %v227, %v219
    %v348 = vpack.c.b16 %v228, %v220
    %v349 = vpack.c.b16 %v229, %v221
    %v350 = vpack.c.b16 %v238, %v230
    %v351 = vpack.c.b16 %v239, %v231
    %v352 = vpack.c.b16 %v240, %v232
    %v353 = vpack.c.b16 %v241, %v233
    %v354 = vpack.c.b16 %v242, %v234
    %v355 = vpack.c.b16 %v243, %v235
    %v356 = vpack.c.b16 %v244, %v236
    %v357 = vpack.c.b16 %v245, %v237
    %v358 = vpack.c.b16 %v254, %v246
    %v359 = vpack.c.b16 %v255, %v247
    %v360 = vpack.c.b16 %v256, %v248
    %v361 = vpack.c.b16 %v257, %v249
    %v362 = vpack.c.b16 %v258, %v250
    %v363 = vpack.c.b16 %v259, %v251
    %v364 = vpack.c.b16 %v260, %v252
    %v365 = vpack.c.b16 %v261, %v253
    %v366 = vpack.c.b16 %v270, %v262
    %v367 = vpack.c.b16 %v271, %v263
    %v368 = vpack.c.b16 %v272, %v264
    %v369 = vpack.c.b16 %v273, %v265
    %v370 = vpack.c.b16 %v274, %v266
    %v371 = vpack.c.b16 %v275, %v267
    %v372 = vpack.c.b16 %v276, %v268
    %v373 = vpack.c.b16 %v277, %v269
    %v374 = vpack.c.b16 %v286, %v278
    %v375 = vpack.c.b16 %v287, %v279
    %v376 = vpack.c.b16 %v288, %v280
    %v377 = vpack.c.b16 %v289, %v281
    %v378 = vpack.c.b16 %v290, %v282
    %v379 = vpack.c.b16 %v291, %v283
    %v380 = vpack.c.b16 %v292, %v284
    %v381 = vpack.c.b16 %v293, %v285
    %v382 = vpack.c.b16 %v302, %v294
    %v383 = vpack.c.b16 %v303, %v295
    %v384 = vpack.c.b16 %v304, %v296
    %v385 = vpack.c.b16 %v305, %v297
    %v386 = vpack.c.b16 %v306, %v298
    %v387 = vpack.c.b16 %v307, %v299
    %v388 = vpack.c.b16 %v308, %v300
    %v389 = vpack.c.b16 %v309, %v301
    %v390 = vpack.c.b16 %v318, %v310
    %v391 = vpack.c.b16 %v319, %v311
    %v392 = vpack.c.b16 %v320, %v312
    %v393 = vpack.c.b16 %v321, %v313
    %v394 = vpack.c.b16 %v322, %v314
    %v395 = vpack.c.b16 %v323, %v315
    %v396 = vpack.c.b16 %v324, %v316
    %v397 = vpack.c.b16 %v325, %v317
    %v398 = vpack.c.b16 %v334, %v326
    %v399 = vpack.c.b16 %v335, %v327
    %v400 = vpack.c.b16 %v336, %v328
    %v401 = vpack.c.b16 %v337, %v329
    %v402 = vpack.c.b16 %v338, %v330
    %v403 = vpack.c.b16 %v339, %v331
    %v404 = vpack.c.b16 %v340, %v332
    %v405 = vpack.c.b16 %v341, %v333
    %470 = vmatpush.bf16.msra.mxu0 %v398
    %471 = vmatpush.bf16.msra.mxu0 %v390
    %472 = vmatpush.bf16.msra.mxu0 %v382
    %473 = vmatpush.bf16.msra.mxu0 %v374
    %474 = vmatpush.bf16.msra.mxu0 %v366
    %475 = vmatpush.bf16.msra.mxu0 %v358
    %476 = vmatpush.bf16.msra.mxu0 %v350
    %477 = vmatpush.bf16.msra.mxu0 %v342
    %478 = vmatmul.bf16.gmra.mxu0 %v148
    %v479 = vpop.f32.mrf.mxu0
    %v480 = vadd.f32 %v128, %v479
    %v481 = vpop.f32.mrf.mxu0
    %v482 = vadd.f32 %v128, %v481
    %483 = vdwg.mxu0
    %484 = vmatpush.bf16.msra.mxu0 %v399
    %485 = vmatpush.bf16.msra.mxu0 %v391
    %486 = vmatpush.bf16.msra.mxu0 %v383
    %487 = vmatpush.bf16.msra.mxu0 %v375
    %488 = vmatpush.bf16.msra.mxu0 %v367
    %489 = vmatpush.bf16.msra.mxu0 %v359
    %490 = vmatpush.bf16.msra.mxu0 %v351
    %491 = vmatpush.bf16.msra.mxu0 %v343
    %492 = vmatmul.bf16.gmra.mxu0 %v148
    %v493 = vpop.f32.mrf.mxu0
    %v494 = vadd.f32 %v129, %v493
    %v495 = vpop.f32.mrf.mxu0
    %v496 = vadd.f32 %v129, %v495
    %497 = vdwg.mxu0
    %498 = vmatpush.bf16.msra.mxu0 %v400
    %499 = vmatpush.bf16.msra.mxu0 %v392
    %500 = vmatpush.bf16.msra.mxu0 %v384
    %501 = vmatpush.bf16.msra.mxu0 %v376
    %502 = vmatpush.bf16.msra.mxu0 %v368
    %503 = vmatpush.bf16.msra.mxu0 %v360
    %504 = vmatpush.bf16.msra.mxu0 %v352
    %505 = vmatpush.bf16.msra.mxu0 %v344
    %506 = vmatmul.bf16.gmra.mxu0 %v148
    %v507 = vpop.f32.mrf.mxu0
    %v508 = vadd.f32 %v130, %v507
    %v509 = vpop.f32.mrf.mxu0
    %v510 = vadd.f32 %v130, %v509
    %511 = vdwg.mxu0
    %512 = vmatpush.bf16.msra.mxu0 %v401
    %513 = vmatpush.bf16.msra.mxu0 %v393
    %514 = vmatpush.bf16.msra.mxu0 %v385
    %515 = vmatpush.bf16.msra.mxu0 %v377
    %516 = vmatpush.bf16.msra.mxu0 %v369
    %517 = vmatpush.bf16.msra.mxu0 %v361
    %518 = vmatpush.bf16.msra.mxu0 %v353
    %519 = vmatpush.bf16.msra.mxu0 %v345
    %520 = vmatmul.bf16.gmra.mxu0 %v148
    %v521 = vpop.f32.mrf.mxu0
    %v522 = vadd.f32 %v131, %v521
    %v523 = vpop.f32.mrf.mxu0
    %v524 = vadd.f32 %v131, %v523
    %525 = vdwg.mxu0
    %526 = vmatpush.bf16.msra.mxu0 %v402
    %527 = vmatpush.bf16.msra.mxu0 %v394
    %528 = vmatpush.bf16.msra.mxu0 %v386
    %529 = vmatpush.bf16.msra.mxu0 %v378
    %530 = vmatpush.bf16.msra.mxu0 %v370
    %531 = vmatpush.bf16.msra.mxu0 %v362
    %532 = vmatpush.bf16.msra.mxu0 %v354
    %533 = vmatpush.bf16.msra.mxu0 %v346
    %534 = vmatmul.bf16.gmra.mxu0 %v148
    %v535 = vpop.f32.mrf.mxu0
    %v536 = vadd.f32 %v132, %v535
    %v537 = vpop.f32.mrf.mxu0
    %v538 = vadd.f32 %v132, %v537
    %539 = vdwg.mxu0
    %540 = vmatpush.bf16.msra.mxu0 %v403
    %541 = vmatpush.bf16.msra.mxu0 %v395
    %542 = vmatpush.bf16.msra.mxu0 %v387
    %543 = vmatpush.bf16.msra.mxu0 %v379
    %544 = vmatpush.bf16.msra.mxu0 %v371
    %545 = vmatpush.bf16.msra.mxu0 %v363
    %546 = vmatpush.bf16.msra.mxu0 %v355
    %547 = vmatpush.bf16.msra.mxu0 %v347
    %548 = vmatmul.bf16.gmra.mxu0 %v148
    %v549 = vpop.f32.mrf.mxu0
    %v550 = vadd.f32 %v133, %v549
    %v551 = vpop.f32.mrf.mxu0
    %v552 = vadd.f32 %v133, %v551
    %553 = vdwg.mxu0
    %554 = vmatpush.bf16.msra.mxu0 %v404
    %555 = vmatpush.bf16.msra.mxu0 %v396
    %556 = vmatpush.bf16.msra.mxu0 %v388
    %557 = vmatpush.bf16.msra.mxu0 %v380
    %558 = vmatpush.bf16.msra.mxu0 %v372
    %559 = vmatpush.bf16.msra.mxu0 %v364
    %560 = vmatpush.bf16.msra.mxu0 %v356
    %561 = vmatpush.bf16.msra.mxu0 %v348
    %562 = vmatmul.bf16.gmra.mxu0 %v148
    %v563 = vpop.f32.mrf.mxu0
    %v564 = vadd.f32 %v134, %v563
    %v565 = vpop.f32.mrf.mxu0
    %v566 = vadd.f32 %v134, %v565
    %567 = vdwg.mxu0
    %568 = vmatpush.bf16.msra.mxu0 %v405
    %569 = vmatpush.bf16.msra.mxu0 %v397
    %570 = vmatpush.bf16.msra.mxu0 %v389
    %571 = vmatpush.bf16.msra.mxu0 %v381
    %572 = vmatpush.bf16.msra.mxu0 %v373
    %573 = vmatpush.bf16.msra.mxu0 %v365
    %574 = vmatpush.bf16.msra.mxu0 %v357
    %575 = vmatpush.bf16.msra.mxu0 %v349
    %576 = vmatmul.bf16.gmra.mxu0 %v148
    %v577 = vpop.f32.mrf.mxu0
    %v578 = vadd.f32 %v135, %v577
    %v579 = vpop.f32.mrf.mxu0
    %v580 = vadd.f32 %v135, %v579
    %581 = vdwg.mxu0
    %582 = vst [vmem:[#allocation8] sm:$0xff] %v480
    %583 = vst [vmem:[#allocation8 + $0x8] sm:$0xff] %v494
    %584 = vst [vmem:[#allocation8 + $0x10] sm:$0xff] %v508
    %585 = vst [vmem:[#allocation8 + $0x18] sm:$0xff] %v522
    %586 = vst [vmem:[#allocation8 + $0x20] sm:$0xff] %v536
    %587 = vst [vmem:[#allocation8 + $0x28] sm:$0xff] %v550
    %588 = vst [vmem:[#allocation8 + $0x30] sm:$0xff] %v564
    %589 = vst [vmem:[#allocation8 + $0x38] sm:$0xff] %v578
    %590 = vst [vmem:[#allocation8 + $0x40] sm:$0xff] %v482
    %591 = vst [vmem:[#allocation8 + $0x48] sm:$0xff] %v496
    %592 = vst [vmem:[#allocation8 + $0x50] sm:$0xff] %v510
    %593 = vst [vmem:[#allocation8 + $0x58] sm:$0xff] %v524
    %594 = vst [vmem:[#allocation8 + $0x60] sm:$0xff] %v538
    %595 = vst [vmem:[#allocation8 + $0x68] sm:$0xff] %v552
    %596 = vst [vmem:[#allocation8 + $0x70] sm:$0xff] %v566
    %597 = vst [vmem:[#allocation8 + $0x78] sm:$0xff] %v580
    // Predicated region
    $region26: #{tpu_custom_call.1} parent=1 // pred_check
      _
    $region27: #{tpu_custom_call.1} parent=1 // pred_check_branch
      %599 = sbr.rel (0) target = $region29
    $region28: #{tpu_custom_call.1} parent=1 // pred_region
      %601 = vsyncadd [#allocation4], 0
      %s602 = sshll.u32 [#allocation8], 4
      %s603 = int_to_ptr.vmem [resolvable:$true] %s602
      %s604 = sshll.u32 %s3, 4
      %s605 = int_to_ptr.hbm [resolvable:$true] %s604
      %610 = dma.vmem_to_hbm [thread:$0]  %s603, 2048, %s605, [#allocation4], 1024, 1024, 64
    $region29: #{tpu_custom_call.1} parent=1 // pred_fallthru
      _
    // Predicated region
    $region30: #{tpu_custom_call.1} parent=1 // pred_check
      _
    $region31: #{tpu_custom_call.1} parent=1 // pred_check_branch
      %612 = sbr.rel (0) target = $region33
    $region32: #{tpu_custom_call.1} parent=1 // pred_region
      %614 = dma.done [#allocation4], 2048
    $region33: #{tpu_custom_call.1} parent=1 // pred_fallthru
      _
    %615 = vsyncpa [#allocation3], 1
    %616 = vsyncpa [#allocation6], 1
    %617 = vsyncpa [#allocation4], 1

</llo_original>
